<compile_context>
chip_gen: v6e
topology: v6e:2x2x1
jax: 0.10.0
libtpu: 0.0.40
codegen_flags: <defaults>
</compile_context>

<pallas_src>
import functools

import jax
import jax.numpy as jnp
from jax import lax
from jax.experimental import pallas as pl
from jax.experimental.pallas import tpu as pltpu


def _round_up(a, b):
    return (a + b - 1) // b * b


def _vmem_capacity_bytes():
    """Physical VMEM of the current TPU generation (conservative fallback)."""
    try:
        cap = getattr(pltpu.get_tpu_info(), "vmem_capacity_bytes", None)
        if cap:
            return max(32 << 20, min(int(cap), 128 << 20))
    except Exception:
        pass
    return 64 << 20  # v7x per-TensorCore VMEM (smallest of v5e/v6e/v7x)


def _legal_row_tile(d, NH, W):
    # x block is (d*W, Cin): second-minor dim must be a multiple of 8 or the full extent.
    return d == NH or (d * W) % 8 == 0


def _pick_row_tile(NH, W, Cin, Cout, x_bytes, w_bytes, out_bytes):
    """Pick tm_h (input rows per grid step, a divisor of NH) and vmem_limit_bytes."""
    lanes_cin = _round_up(max(Cin, 1), 128)
    lanes_c4 = _round_up(4 * Cout, 128)
    lanes_c2 = _round_up(2 * Cout, 128)
    sub_w = _round_up(W, 8)

    cap = _vmem_capacity_bytes()
    budget = min(cap // 2, 48 << 20)
    vmem_limit = int(min((cap * 3) // 4, 96 << 20))

    # Resident (double-buffered) packed weight + bias.
    fixed = 2 * _round_up(Cin, 8) * lanes_c4 * w_bytes + 2 * 8 * lanes_c4 * 4
    # Per input row h: x tile (double-buffered), two output planes (double-buffered),
    # and the f32 matmul scratch -- all with lane/sublane padding accounted for.
    per_h = (
        2 * W * lanes_cin * x_bytes
        + 4 * sub_w * lanes_c2 * out_bytes
        + W * lanes_c4 * 4
    )
    avail = max(budget - fixed, 4 * per_h)
    cap_h = int(max(1, min(avail // per_h, 1024)))

    divisors = [d for d in range(1, NH + 1) if NH % d == 0]
    legal = [d for d in divisors if _legal_row_tile(d, NH, W)]  # NH itself is always legal
    fit = [d for d in legal if d <= cap_h]
    tm_h = max(fit) if fit else min(legal)

    # Prefer >= 2 grid steps (v7x megacore sharding / pipeline overlap) when each step
    # still has a reasonable number of matmul rows.
    if tm_h == NH and NH > 1:
        half = [d for d in legal if d <= NH // 2 and d * W >= 64]
        if half:
            tm_h = max(half)
    return int(tm_h), vmem_limit


def _upconv_kernel(x_ref, w_ref, b_ref, o_ref, s_ref, *, tm_h, W, Cout, cast_dtype):
    """One row tile: tm_h input rows (tm_h*W pixels) -> 2*tm_h output rows.

    x_ref: (tm_h*W, Cin)       input pixels, source dtype (cast in-kernel if requested)
    w_ref: (Cin, 4*Cout)       packed weight, columns grouped (kh, kw, cout)
    b_ref: (1, 4*Cout)         packed bias (f32)
    o_ref: (2*tm_h, W, 2*Cout) output planes; plane 2r+kh == NHWC output row 2h+kh
    s_ref: (tm_h*W, 4*Cout)    f32 VMEM scratch holding the matmul result
    """
    x = x_ref[...]
    if cast_dtype is not None:
        x = x.astype(cast_dtype)  # in-kernel cast: no separate XLA cast pass over HBM
    s_ref[...] = (
        jnp.dot(x, w_ref[...], preferred_element_type=jnp.float32) + b_ref[...]
    )

    c2 = 2 * Cout
    aligned = (W % 8) == 0

    def body(r, carry):
        start = r * W
        if aligned:
            start = pl.multiple_of(start, 8)
        row = s_ref[pl.ds(start, W), :]                       # (W, 4*Cout) f32
        o_ref[2 * r] = row[:, :c2].astype(o_ref.dtype)        # kh = 0 -> output row 2h
        o_ref[2 * r + 1] = row[:, c2:].astype(o_ref.dtype)    # kh = 1 -> output row 2h+1
        return carry

    lax.fori_loop(0, tm_h, body, 0)


def upconv_pallas_nhwc(x_nhwc, weight, bias, *, use_bf16=True, out_dtype=None):
    """ConvTranspose2d(k=2, s=2) forward, NHWC in / NHWC out.

    x_nhwc : (N, H, W, Cin)
    weight : (Cin, Cout, 2, 2)   -- PyTorch ConvTranspose2d weight layout
    bias   : (Cout,)
    returns: (N, 2H, 2W, Cout)
    """
    N, H, W, Cin = x_nhwc.shape
    Cout = weight.shape[1]
    out_dtype = x_nhwc.dtype if out_dtype is None else jnp.dtype(out_dtype)

    # (Cin, Cout, 2, 2) -> (Cin, 2, 2, Cout) -> (Cin, 4*Cout); col = kh*2*Cout + kw*Cout + c.
    w_packed = jnp.transpose(weight, (0, 2, 3, 1)).reshape(Cin, 4 * Cout)
    b_packed = jnp.tile(bias.astype(jnp.float32), 4).reshape(1, 4 * Cout)

    # bf16 MXU inputs with f32 accumulation; activations are cast inside the kernel.
    compute_dtype = (
        jnp.bfloat16 if (use_bf16 and x_nhwc.dtype == jnp.float32) else x_nhwc.dtype
    )
    cast_dtype = compute_dtype if compute_dtype != x_nhwc.dtype else None
    w_packed = w_packed.astype(compute_dtype)

    x_flat = x_nhwc.reshape(N * H * W, Cin)   # free reshape, source dtype (no wrapper cast)

    NH = N * H
    tm_h, vmem_limit = _pick_row_tile(
        NH, W, Cin, Cout,
        jnp.dtype(x_nhwc.dtype).itemsize,
        jnp.dtype(compute_dtype).itemsize,
        jnp.dtype(out_dtype).itemsize,
    )
    n_row = NH // tm_h

    kernel = functools.partial(
        _upconv_kernel, tm_h=tm_h, W=W, Cout=Cout, cast_dtype=cast_dtype
    )

    out3 = pl.pallas_call(
        kernel,
        out_shape=jax.ShapeDtypeStruct((2 * NH, W, 2 * Cout), out_dtype),
        grid_spec=pltpu.PrefetchScalarGridSpec(
            num_scalar_prefetch=0,
            grid=(n_row,),
            in_specs=[
                pl.BlockSpec((tm_h * W, Cin), lambda i: (i, 0)),
                pl.BlockSpec((Cin, 4 * Cout), lambda i: (0, 0)),   # fully resident weight
                pl.BlockSpec((1, 4 * Cout), lambda i: (0, 0)),     # fully resident bias
            ],
            out_specs=pl.BlockSpec((2 * tm_h, W, 2 * Cout), lambda i: (i, 0, 0)),
            scratch_shapes=[pltpu.VMEM((tm_h * W, 4 * Cout), jnp.float32)],
        ),
        compiler_params=pltpu.CompilerParams(
            dimension_semantics=("parallel",),
            vmem_limit_bytes=vmem_limit,
        ),
    )(x_flat, w_packed, b_packed)

    # (2*N*H, W, 2*Cout) row-major == NHWC (N, 2H, 2W, Cout): free reshape, no transpose.
    return out3.reshape(N, 2 * H, 2 * W, Cout)


def upconv_pallas(x_nchw, weight, bias, *, use_bf16=True, out_dtype=None):
    """PyTorch-layout wrapper: NCHW in / NCHW out (matches nn.ConvTranspose2d)."""
    x_nhwc = jnp.transpose(x_nchw, (0, 2, 3, 1))
    y_nhwc = upconv_pallas_nhwc(
        x_nhwc, weight, bias, use_bf16=use_bf16, out_dtype=out_dtype
    )
    return jnp.transpose(y_nhwc, (0, 3, 1, 2))


def upconv_reference(x_nchw, weight, bias):
    """Pure-JAX reference for ConvTranspose2d(k=2, s=2)."""
    N, Cin, H, W = x_nchw.shape
    Cout = weight.shape[1]
    # out[n, oc, 2h+kh, 2w+kw] = sum_ic x[n, ic, h, w] * weight[ic, oc, kh, kw] + bias[oc]
    y = jnp.einsum("nihw,ioab->nhawbo", x_nchw, weight)  # (N, H, 2, W, 2, Cout)
    y = y.reshape(N, 2 * H, 2 * W, Cout) + bias[None, None, None, :]
    return jnp.transpose(y, (0, 3, 1, 2))


if __name__ == "__main__":
    key = jax.random.PRNGKey(0)
    k_x, k_w, k_b = jax.random.split(key, 3)

    N, Cin, Cout, H, W = 2, 8, 4, 16, 16

    x = jax.random.normal(k_x, (N, Cin, H, W), dtype=jnp.float32)
    # Deterministic "PyTorch-like" uniform init for ConvTranspose2d params.
    fan = Cin * 2 * 2
    bound = 1.0 / (fan ** 0.5)
    weight = jax.random.uniform(
        k_w, (Cin, Cout, 2, 2), minval=-bound, maxval=bound, dtype=jnp.float32
    )
    bias = jax.random.uniform(
        k_b, (Cout,), minval=-bound, maxval=bound, dtype=jnp.float32
    )

    ref = upconv_reference(x, weight, bias)

    # Exact-precision path (parity with the PyTorch module).
    f32_fn = jax.jit(functools.partial(upconv_pallas, use_bf16=False))
    out_f32 = jax.block_until_ready(f32_fn(x, weight, bias))
    assert out_f32.shape == (N, Cout, 2 * H, 2 * W), out_f32.shape
    assert jnp.allclose(out_f32, ref, atol=1e-4, rtol=1e-4), "f32 path mismatch vs reference"

    # Default fast path: bf16 MXU inputs (cast in-kernel), f32 accumulation.
    bf16_fn = jax.jit(functools.partial(upconv_pallas, use_bf16=True))
    out_bf16 = jax.block_until_ready(bf16_fn(x, weight, bias))
    assert out_bf16.shape == (N, Cout, 2 * H, 2 * W), out_bf16.shape
    assert jnp.allclose(out_bf16, ref, atol=5e-2, rtol=5e-2), "bf16 path mismatch vs reference"

    print("KERNEL_OK")
</pallas_src>

<mosaic_0001>
module attributes {stable_mosaic.version = 11 : i64} {
  func.func @_upconv_kernel(%arg0: i32, %arg1: memref<256x8xf32, #tpu.memory_space<vmem>>, %arg2: memref<8x16xf32, #tpu.memory_space<vmem>>, %arg3: memref<1x16xf32, #tpu.memory_space<vmem>>, %arg4: memref<32x16x8xf32, #tpu.memory_space<vmem>>, %arg5: memref<256x16xf32, #tpu.memory_space<vmem>>) attributes {dimension_semantics = [#tpu.dimension_semantics<parallel>], iteration_bounds = array<i64: 2>, scalar_prefetch = 0 : i64, scratch_operands = 1 : i64, tpu.core_type = #tpu.core_type<tc>, window_params = [{transform_indices = @transform_0, window_bounds = array<i64: 256, 8>}, {pipeline_mode = #tpu.pipeline_mode<synchronous>, transform_indices = @transform_1, window_bounds = array<i64: 8, 16>}, {pipeline_mode = #tpu.pipeline_mode<synchronous>, transform_indices = @transform_2, window_bounds = array<i64: 1, 16>}, {transform_indices = @transform_3, window_bounds = array<i64: 32, 16, 8>}]} {
    %c0 = arith.constant 0 : index
    %c0_0 = arith.constant 0 : index
    %0 = vector.load %arg1[%c0, %c0_0] : memref<256x8xf32, #tpu.memory_space<vmem>>, vector<256x8xf32>
    %c0_1 = arith.constant 0 : index
    %c0_2 = arith.constant 0 : index
    %1 = vector.load %arg2[%c0_1, %c0_2] : memref<8x16xf32, #tpu.memory_space<vmem>>, vector<8x16xf32>
    %cst = arith.constant dense<0.000000e+00> : vector<256x16xf32>
    %2 = tpu.matmul %0, %1, %cst {dimension_numbers = #tpu.dot_dimension_numbers<[1], [0], [0], [1], [0, 0, 1, 1], [], []>} : vector<256x8xf32>, vector<8x16xf32>, vector<256x16xf32> -> vector<256x16xf32>
    %c0_3 = arith.constant 0 : index
    %c0_4 = arith.constant 0 : index
    %3 = vector.load %arg3[%c0_3, %c0_4] : memref<1x16xf32, #tpu.memory_space<vmem>>, vector<1x16xf32>
    %4 = vector.broadcast %3 : vector<1x16xf32> to vector<256x16xf32>
    %5 = arith.addf %2, %4 : vector<256x16xf32>
    %c0_5 = arith.constant 0 : index
    %c0_6 = arith.constant 0 : index
    %6 = vector.load %arg5[%c0_5, %c0_6] : memref<256x16xf32, #tpu.memory_space<vmem>>, vector<256x16xf32>
    tpu.vector_store %arg5[%c0_5, %c0_6], %5 {strides = array<i32>} : memref<256x16xf32, #tpu.memory_space<vmem>>, vector<256x16xf32>,
    %c0_i32 = arith.constant 0 : i32
    %c16_i32 = arith.constant 16 : i32
    %7 = arith.addi %c0_i32, %c16_i32 : i32
    %c1_i32 = arith.constant 1 : i32
    scf.for %arg6 = %c0_i32 to %7 step %c1_i32  : i32 {
      %c16_i32_8 = arith.constant 16 : i32
      %8 = arith.muli %arg6, %c16_i32_8 : i32
      %9 = tpu.assume_multiple %8, 8 : i32
      %10 = arith.index_cast %9 : i32 to index
      %c0_9 = arith.constant 0 : index
      %11 = vector.load %arg5[%10, %c0_9] : memref<256x16xf32, #tpu.memory_space<vmem>>, vector<16x16xf32>
      %12 = vector.extract_strided_slice %11 {offsets = [0, 0], sizes = [16, 8], strides = [1, 1]} : vector<16x16xf32> to vector<16x8xf32>
      %c2_i32 = arith.constant 2 : i32
      %13 = arith.muli %c2_i32, %arg6 : i32
      %14 = arith.index_cast %13 : i32 to index
      %c0_10 = arith.constant 0 : index
      %c0_11 = arith.constant 0 : index
      %15 = vector.load %arg4[%14, %c0_10, %c0_11] : memref<32x16x8xf32, #tpu.memory_space<vmem>>, vector<1x16x8xf32>
      %16 = vector.shape_cast %15 : vector<1x16x8xf32> to vector<16x8xf32>
      %17 = vector.shape_cast %12 : vector<16x8xf32> to vector<1x16x8xf32>
      tpu.vector_store %arg4[%14, %c0_10, %c0_11], %17 {strides = array<i32>} : memref<32x16x8xf32, #tpu.memory_space<vmem>>, vector<1x16x8xf32>,
      %18 = vector.extract_strided_slice %11 {offsets = [0, 8], sizes = [16, 8], strides = [1, 1]} : vector<16x16xf32> to vector<16x8xf32>
      %c2_i32_12 = arith.constant 2 : i32
      %19 = arith.muli %c2_i32_12, %arg6 : i32
      %c1_i32_13 = arith.constant 1 : i32
      %20 = arith.addi %19, %c1_i32_13 : i32
      %21 = arith.index_cast %20 : i32 to index
      %c0_14 = arith.constant 0 : index
      %c0_15 = arith.constant 0 : index
      %22 = vector.load %arg4[%21, %c0_14, %c0_15] : memref<32x16x8xf32, #tpu.memory_space<vmem>>, vector<1x16x8xf32>
      %23 = vector.shape_cast %22 : vector<1x16x8xf32> to vector<16x8xf32>
      %24 = vector.shape_cast %18 : vector<16x8xf32> to vector<1x16x8xf32>
      tpu.vector_store %arg4[%21, %c0_14, %c0_15], %24 {strides = array<i32>} : memref<32x16x8xf32, #tpu.memory_space<vmem>>, vector<1x16x8xf32>,
    }
    %c16_i32_7 = arith.constant 16 : i32
    return
  }
  func.func @transform_0(%arg0: i32) -> (i32, i32) {
    %c0_i32 = arith.constant 0 : i32
    %c0_i32_0 = arith.constant 0 : i32
    return %arg0, %c0_i32 : i32, i32
  }
  func.func @transform_1(%arg0: i32) -> (i32, i32) {
    %c0_i32 = arith.constant 0 : i32
    %c0_i32_0 = arith.constant 0 : i32
    %c0_i32_1 = arith.constant 0 : i32
    return %c0_i32, %c0_i32_0 : i32, i32
  }
  func.func @transform_2(%arg0: i32) -> (i32, i32) {
    %c0_i32 = arith.constant 0 : i32
    %c0_i32_0 = arith.constant 0 : i32
    %c0_i32_1 = arith.constant 0 : i32
    return %c0_i32, %c0_i32_0 : i32, i32
  }
  func.func @transform_3(%arg0: i32) -> (i32, i32, i32) {
    %c0_i32 = arith.constant 0 : i32
    %c0_i32_0 = arith.constant 0 : i32
    %c0_i32_1 = arith.constant 0 : i32
    return %arg0, %c0_i32, %c0_i32_0 : i32, i32, i32
  }
}

</mosaic_0001>

<llo_original>
// kernel: tile.9
$region0: #{tile.9}
  %s0 = inlined_call_operand.vmem [shape: f32[4,4], index: 0, kind: input, shape index: {}]
  %s1 = inlined_call_operand.vmem [shape: f32[1,16], index: 1, kind: output, shape index: {}]
  $region1: #{tile.9} parent=0
    #allocation0 [shape = 'u8[4096]{0}', space=vmem, size = 0x1000, scoped, tag = 'scoped mem for output reshape']
    #allocation1 [shape = 'u8[4096]{0}', space=vmem, size = 0x1000, scoped, tag = 'scoped mem for input reshape']
    %s3 = sshll.u32 1, 4
    %s4 = ssub.s32 %s3, 1
    %v5 = vld [vmem:[%s0] sm:%s4]
    %6 = vst [vmem:[#allocation1] sm:%s4] %v5
    %v7 = vld [vmem:[#allocation1] sm:$0x1]
    %vm8 = vcmask 31744
    %9 = vst.msk [vmem:[#allocation0] sm:$0x1] %vm8, %v7
    %s10 = scalar_lea.vmem [#allocation1], 3
    %v11 = vld [vmem:[%s10] sm:$0x1]
    %12 = vrot.lane.b32.xlu0 %v11, 12
    %v13 = vpop.permute.xlu0 %12
    %vm14 = vcmask 130144
    %15 = vst.msk [vmem:[#allocation0] sm:$0x1] %vm14, %v13
    %s16 = scalar_lea.vmem [#allocation1], 2
    %v17 = vld [vmem:[%s16] sm:$0x1]
    %18 = vrot.lane.b32.xlu0 %v17, 8
    %v19 = vpop.permute.xlu0 %18
    %vm20 = vcmask 97344
    %21 = vst.msk [vmem:[#allocation0] sm:$0x1] %vm20, %v19
    %s22 = scalar_lea.vmem [#allocation1], 1
    %v23 = vld [vmem:[%s22] sm:$0x1]
    %24 = vrot.lane.b32.xlu0 %v23, 4
    %v25 = vpop.permute.xlu0 %24
    %vm26 = vcmask 64544
    %27 = vst.msk [vmem:[#allocation0] sm:$0x1] %vm26, %v25
    %s29 = sshll.u32 1, 1
    %s30 = ssub.s32 %s29, 1
    %v32 = vld [vmem:[#allocation0] sm:%s30]
    %s33 = sshll.u32 1, 1
    %s34 = ssub.s32 %s33, 1
    %35 = vst [vmem:[%s1] sm:%s34] %v32

// kernel: tile.8
$region0: #{tile.8}
  #allocation0 [shape = 's32[1]{0}', space=sflag, size = 0x4, scoped, tag = 'scoped memory for tile.8']
  %s0 = inlined_call_operand.vmem [shape: f32[4], index: 0, kind: input, shape index: {}]
  %s1 = inlined_call_operand.vmem [shape: f32[4,4], index: 1, kind: output, shape index: {}]
  // Predicated region
  $region2: #{tile.8} parent=0 // pred_check
    _
  $region3: #{tile.8} parent=0 // pred_check_branch
    %3 = sbr.rel (0) target = $region5
  $region4: #{tile.8} parent=0 // pred_region
    _
  $region5: #{tile.8} parent=0 // pred_fallthru
    _
  %v4 = vld [vmem:[%s0] ss:$0 sm:$0xff]
  %5 = vst [vmem:[%s1] sm:$0xf] %v4

// kernel: upconv_pallas.1
$region0: #{upconv_pallas.1}
  #allocation0 [shape = 'u32[]', space=smem, size = 0x4, offset = 0x4, fixed_abs, tag = 'smem constant byte address 0x4 - core index']
  #allocation1 [shape = 'u32[144,128]{1,0:T(1,128)}', space=vmem, size = 0x12000, scoped, tag = 'internal scratch']
  #allocation2 [shape = 'f32[256,16]{1,0:T(8,128)}', space=vmem, size = 0x20000, scoped, tag = 'scratch operand']
  %s0 = inlined_call_operand.vmem [shape: f32[512,8], index: 0, kind: input, shape index: {}]
  %s1 = inlined_call_operand.vmem [shape: f32[8,16], index: 1, kind: input, shape index: {}]
  %s2 = inlined_call_operand.vmem [shape: f32[1,16], index: 2, kind: input, shape index: {}]
  %s3 = inlined_call_operand.vmem [shape: f32[64,16,8], index: 3, kind: output, shape index: {}]
  %s4 = sld [smem:[#allocation0]]
  $region52: #{upconv_pallas.1} parent=0
    _
  %s6 = ssub.s32 1, %s4
  %s7 = scalar_select 0, %s6, %s4
  loop: start=0, step=1, limit=4
  $region2: #{upconv_pallas.1} parent=0 // loop_pre_header
    _
  $region3: #{upconv_pallas.1} parent=0 // loop_header
    %s9 = sphi 0, %s13
    %p10 = scmp.ge.s32.totalorder %s9, 4
    %s19 = sphi 0, %s21
    %s22 = sphi 0, %s19
    %s23 = sphi 0, %s22
    %s39 = sphi 0, %s23
    %s43 = sphi 0, %s43
    %s45 = sphi 0, %s43
    %s46 = sphi 0, %s45
    %s60 = sphi 0, %s46
    %s64 = sphi 0, %s64
    %s66 = sphi 0, %s64
    %s67 = sphi 0, %s66
    %s81 = sphi 0, %s67
    %s87 = sphi 0, %s89
    %s90 = sphi 0, %s87
    %s91 = sphi 0, %s90
    %s107 = sphi 0, %s91
  $region4: #{upconv_pallas.1} parent=0 // loop_header_branch
    %12 = sbr.rel (%p10) target = $region8
  $region5: #{upconv_pallas.1} parent=0 // loop_body
    %s14 = ssub.s32 %s9, 1
    %s15 = ssub.s32 %s9, 2
    %s16 = sadd.s32 %s9, 1
    %s17 = ssub.s32 %s9, %s16
    %p18 = scmp.eq.s32.totalorder %s17, 0
    %s20 = sadd.s32 %s19, 1
    %s21 = scalar_select %p18, %s19, %s20
    %p24 = pneg %p18
    %p25 = scmp.eq.s32.totalorder %s9, 1
    %p26 = por %p24, %p25
    %p27 = scmp.ne.s32.totalorder %s19, %s22
    %p28 = scmp.eq.s32.totalorder %s9, 0
    %p29 = por %p27, %p28
    %p30 = scmp.ne.s32.totalorder %s19, %s22
    %p31 = scmp.eq.s32.totalorder %s14, 1
    %p32 = por %p30, %p31
    %p33 = scmp.ne.s32.totalorder %s22, %s23
    %p34 = scmp.eq.s32.totalorder %s14, 0
    %p35 = por %p33, %p34
    %p36 = scmp.ne.s32.totalorder %s22, %s23
    %p37 = scmp.eq.s32.totalorder %s15, 1
    %p38 = por %p36, %p37
    %p40 = scmp.ne.s32.totalorder %s23, %s39
    %p41 = scmp.eq.s32.totalorder %s15, 0
    %p42 = por %p40, %p41
    %s44 = sadd.s32 %s43, 1
    %p47 = scmp.eq.s32.totalorder %s9, 1
    %p48 = scmp.ne.s32.totalorder %s43, %s45
    %p49 = scmp.eq.s32.totalorder %s9, 0
    %p50 = por %p48, %p49
    %p51 = scmp.ne.s32.totalorder %s43, %s45
    %p52 = scmp.eq.s32.totalorder %s14, 1
    %p53 = por %p51, %p52
    %p54 = scmp.ne.s32.totalorder %s45, %s46
    %p55 = scmp.eq.s32.totalorder %s14, 0
    %p56 = por %p54, %p55
    %p57 = scmp.ne.s32.totalorder %s45, %s46
    %p58 = scmp.eq.s32.totalorder %s15, 1
    %p59 = por %p57, %p58
    %p61 = scmp.ne.s32.totalorder %s46, %s60
    %p62 = scmp.eq.s32.totalorder %s15, 0
    %p63 = por %p61, %p62
    %s65 = sadd.s32 %s64, 1
    %p68 = scmp.eq.s32.totalorder %s9, 1
    %p69 = scmp.ne.s32.totalorder %s64, %s66
    %p70 = scmp.eq.s32.totalorder %s9, 0
    %p71 = por %p69, %p70
    %p72 = scmp.ne.s32.totalorder %s64, %s66
    %p73 = scmp.eq.s32.totalorder %s14, 1
    %p74 = por %p72, %p73
    %p75 = scmp.ne.s32.totalorder %s66, %s67
    %p76 = scmp.eq.s32.totalorder %s14, 0
    %p77 = por %p75, %p76
    %p78 = scmp.ne.s32.totalorder %s66, %s67
    %p79 = scmp.eq.s32.totalorder %s15, 1
    %p80 = por %p78, %p79
    %p82 = scmp.ne.s32.totalorder %s67, %s81
    %p83 = scmp.eq.s32.totalorder %s15, 0
    %p84 = por %p82, %p83
    %s85 = ssub.s32 %s9, %s16
    %p86 = scmp.eq.s32.totalorder %s85, 0
    %s88 = sadd.s32 %s87, 1
    %s89 = scalar_select %p86, %s87, %s88
    %p92 = pneg %p86
    %p93 = scmp.eq.s32.totalorder %s9, 1
    %p94 = por %p92, %p93
    %p95 = scmp.ne.s32.totalorder %s87, %s90
    %p96 = scmp.eq.s32.totalorder %s9, 0
    %p97 = por %p95, %p96
    %p98 = scmp.ne.s32.totalorder %s87, %s90
    %p99 = scmp.eq.s32.totalorder %s14, 1
    %p100 = por %p98, %p99
    %p101 = scmp.ne.s32.totalorder %s90, %s91
    %p102 = scmp.eq.s32.totalorder %s14, 0
    %p103 = por %p101, %p102
    %p104 = scmp.ne.s32.totalorder %s90, %s91
    %p105 = scmp.eq.s32.totalorder %s15, 1
    %p106 = por %p104, %p105
    %p108 = scmp.ne.s32.totalorder %s91, %s107
    %p109 = scmp.eq.s32.totalorder %s15, 0
    %p110 = por %p108, %p109
    %p111 = scmp.le.s32.totalorder 1, %s9
    %p112 = scmp.lt.s32.totalorder %s9, 3
    %p113 = pnand %p111, %p112
    %p114 = pneg %p113
    // Predicated region
    $region9: #{upconv_pallas.1} parent=5 // pred_check
      _
    $region10: #{upconv_pallas.1} parent=5 // pred_check_branch
      %116 = sbr.rel (%p113) target = $region12
    $region11: #{upconv_pallas.1} parent=5 // pred_region
      %s117 = ssub.s32 %s9, 1
      // Predicated region
      $region13: #{upconv_pallas.1} parent=11 // pred_check
        %p118 = pneg %p56
      $region14: #{upconv_pallas.1} parent=11 // pred_check_branch
        %120 = sbr.rel (%p118) target = $region16
      $region15: #{upconv_pallas.1} parent=11 // pred_region
        _
      $region16: #{upconv_pallas.1} parent=11 // pred_fallthru
        _
      // Predicated region
      $region17: #{upconv_pallas.1} parent=11 // pred_check
        %p121 = pneg %p77
      $region18: #{upconv_pallas.1} parent=11 // pred_check_branch
        %123 = sbr.rel (%p121) target = $region20
      $region19: #{upconv_pallas.1} parent=11 // pred_region
        _
      $region20: #{upconv_pallas.1} parent=11 // pred_fallthru
        _
    $region12: #{upconv_pallas.1} parent=5 // pred_fallthru
      _
    %p124 = scmp.lt.s32.totalorder %s9, 2
    // Predicated region
    $region21: #{upconv_pallas.1} parent=5 // pred_check
      %p125 = pneg %p124
    $region22: #{upconv_pallas.1} parent=5 // pred_check_branch
      %127 = sbr.rel (%p125) target = $region24
    $region23: #{upconv_pallas.1} parent=5 // pred_region
      // Predicated region
      $region25: #{upconv_pallas.1} parent=23 // pred_check
        %p128 = pneg %p29
      $region26: #{upconv_pallas.1} parent=23 // pred_check_branch
        %130 = sbr.rel (%p128) target = $region28
      $region27: #{upconv_pallas.1} parent=23 // pred_region
        %s131 = smul.u32 32, %s9
        %p132 = scmp.lt.s32.totalorder %s131, 63
        %s133 = scalar_select %p132, %s131, 63
        %s134 = smul.addr %s133, 8
        %s135 = scalar_lea.vmem %s0, %s134
        %s136 = smul.u32 32, %s9
      $region28: #{upconv_pallas.1} parent=23 // pred_fallthru
        _
    $region24: #{upconv_pallas.1} parent=5 // pred_fallthru
      _
    %p137 = scmp.le.s32.totalorder 1, %s9
    %p138 = scmp.lt.s32.totalorder %s9, 3
    %p139 = pnand %p137, %p138
    %p140 = pneg %p139
    // Predicated region
    $region29: #{upconv_pallas.1} parent=5 // pred_check
      _
    $region30: #{upconv_pallas.1} parent=5 // pred_check_branch
      %142 = sbr.rel (%p139) target = $region32
    $region31: #{upconv_pallas.1} parent=5 // pred_region
      %s143 = ssub.s32 %s9, 1
      %s144 = smul.u32 32, %s14
      %p145 = scmp.lt.s32.totalorder %s144, 63
      %s146 = scalar_select %p145, %s144, 63
      %s147 = smul.addr %s146, 8
      %s148 = scalar_lea.vmem %s0, %s147
      %p149 = pneg %p35
      %p150 = pneg %p32
      %p151 = pneg %p56
      %p152 = pneg %p53
      %p153 = pneg %p77
      %p154 = pneg %p74
      %p155 = pneg %p103
      %p156 = pneg %p100
      %s157 = smul.u32 32, %s14
      %p158 = scmp.lt.s32.totalorder %s157, 63
      %s159 = scalar_select %p158, %s157, 63
      %s160 = smul.addr %s159, 2
      %s161 = smul.addr %s160, 8
      %s162 = scalar_lea.vmem %s3, %s161
      %s163 = smul.u32 32, %s14
      %p164 = scmp.lt.s32.totalorder %s163, 63
      %s165 = scalar_select %p164, %s163, 63
      %s166 = smul.addr %s165, 8
      %s167 = scalar_lea.vmem %s0, %s166
      %s168 = smul.u32 32, %s14
      %s169 = smul.u32 32, %s14
      %p170 = scmp.lt.s32.totalorder %s169, 63
      %s171 = scalar_select %p170, %s169, 63
      %s172 = smul.addr %s171, 2
      %s173 = smul.addr %s172, 8
      %s174 = scalar_lea.vmem %s3, %s173
      %s175 = smul.u32 32, %s14
      %v176 = vld [vmem:[%s167] sm:$0xff]
      %v177 = vld [vmem:[%s167 + $0x8] sm:$0xff]
      %v178 = vld [vmem:[%s167 + $0x10] sm:$0xff]
      %v179 = vld [vmem:[%s167 + $0x18] sm:$0xff]
      %v180 = vld [vmem:[%s167 + $0x20] sm:$0xff]
      %v181 = vld [vmem:[%s167 + $0x28] sm:$0xff]
      %v182 = vld [vmem:[%s167 + $0x30] sm:$0xff]
      %v183 = vld [vmem:[%s167 + $0x38] sm:$0xff]
      %v184 = vld [vmem:[%s167 + $0x40] sm:$0xff]
      %v185 = vld [vmem:[%s167 + $0x48] sm:$0xff]
      %v186 = vld [vmem:[%s167 + $0x50] sm:$0xff]
      %v187 = vld [vmem:[%s167 + $0x58] sm:$0xff]
      %v188 = vld [vmem:[%s167 + $0x60] sm:$0xff]
      %v189 = vld [vmem:[%s167 + $0x68] sm:$0xff]
      %v190 = vld [vmem:[%s167 + $0x70] sm:$0xff]
      %v191 = vld [vmem:[%s167 + $0x78] sm:$0xff]
      %v192 = vld [vmem:[%s167 + $0x80] sm:$0xff]
      %v193 = vld [vmem:[%s167 + $0x88] sm:$0xff]
      %v194 = vld [vmem:[%s167 + $0x90] sm:$0xff]
      %v195 = vld [vmem:[%s167 + $0x98] sm:$0xff]
      %v196 = vld [vmem:[%s167 + $0xa0] sm:$0xff]
      %v197 = vld [vmem:[%s167 + $0xa8] sm:$0xff]
      %v198 = vld [vmem:[%s167 + $0xb0] sm:$0xff]
      %v199 = vld [vmem:[%s167 + $0xb8] sm:$0xff]
      %v200 = vld [vmem:[%s167 + $0xc0] sm:$0xff]
      %v201 = vld [vmem:[%s167 + $0xc8] sm:$0xff]
      %v202 = vld [vmem:[%s167 + $0xd0] sm:$0xff]
      %v203 = vld [vmem:[%s167 + $0xd8] sm:$0xff]
      %v204 = vld [vmem:[%s167 + $0xe0] sm:$0xff]
      %v205 = vld [vmem:[%s167 + $0xe8] sm:$0xff]
      %v206 = vld [vmem:[%s167 + $0xf0] sm:$0xff]
      %v207 = vld [vmem:[%s167 + $0xf8] sm:$0xff]
      %v208 = vld [vmem:[%s1] sm:$0xff]
      %v209 = vld [vmem:[%s2] sm:$0x1]
      %v211 = vlaneseq
      %v212 = vshrl.u32 %v211, 7
      %v213 = vsub.s32 0, %v212
      %v214 = vrot.slane %v209, %v213
      %vm216 = vcmask 64512
      %v218 = vsel %vm216, %v176, 0
      %v221 = vsel %vm216, %v177, 0
      %v224 = vsel %vm216, %v178, 0
      %v227 = vsel %vm216, %v179, 0
      %v230 = vsel %vm216, %v180, 0
      %v233 = vsel %vm216, %v181, 0
      %v236 = vsel %vm216, %v182, 0
      %v239 = vsel %vm216, %v183, 0
      %v242 = vsel %vm216, %v184, 0
      %v245 = vsel %vm216, %v185, 0
      %v248 = vsel %vm216, %v186, 0
      %v251 = vsel %vm216, %v187, 0
      %v254 = vsel %vm216, %v188, 0
      %v257 = vsel %vm216, %v189, 0
      %v260 = vsel %vm216, %v190, 0
      %v263 = vsel %vm216, %v191, 0
      %v266 = vsel %vm216, %v192, 0
      %v269 = vsel %vm216, %v193, 0
      %v272 = vsel %vm216, %v194, 0
      %v275 = vsel %vm216, %v195, 0
      %v278 = vsel %vm216, %v196, 0
      %v281 = vsel %vm216, %v197, 0
      %v284 = vsel %vm216, %v198, 0
      %v287 = vsel %vm216, %v199, 0
      %v290 = vsel %vm216, %v200, 0
      %v293 = vsel %vm216, %v201, 0
      %v296 = vsel %vm216, %v202, 0
      %v299 = vsel %vm216, %v203, 0
      %v302 = vsel %vm216, %v204, 0
      %v305 = vsel %vm216, %v205, 0
      %v308 = vsel %vm216, %v206, 0
      %v311 = vsel %vm216, %v207, 0
      %313 = vmatprep.subr.mxu0 0.0
      %314 = vmatpush1.msra.mxu0 0.0
      %315 = vmatprep.subr.mxu0 0.0
      %316 = vmatpush1.msra.mxu0 0.0
      %317 = vmatprep.subr.mxu0 0.0
      %318 = vmatpush1.msra.mxu0 0.0
      %319 = vmatprep.subr.mxu0 0.0
      %320 = vmatpush1.msra.mxu0 0.0
      %321 = vmatprep.subr.mxu0 0.0
      %322 = vmatpush1.msra.mxu0 0.0
      %323 = vmatprep.subr.mxu0 0.0
      %324 = vmatpush1.msra.mxu0 0.0
      %325 = vmatprep.subr.mxu0 0.0
      %326 = vmatpush1.msra.mxu0 0.0
      %327 = vmatprep.subr.mxu0 0.0
      %328 = vmatpush1.msra.mxu0 0.0
      %329 = vmatprep.subr.mxu0 0.0
      %330 = vmatpush1.msra.mxu0 0.0
      %331 = vmatprep.subr.mxu0 0.0
      %332 = vmatpush1.msra.mxu0 0.0
      %333 = vmatprep.subr.mxu0 0.0
      %334 = vmatpush1.msra.mxu0 0.0
      %335 = vmatprep.subr.mxu0 0.0
      %336 = vmatpush1.msra.mxu0 0.0
      %337 = vmatprep.subr.mxu0 0.0
      %338 = vmatpush1.msra.mxu0 0.0
      %339 = vmatprep.subr.mxu0 0.0
      %340 = vmatpush1.msra.mxu0 0.0
      %341 = vmatprep.subr.mxu0 0.0
      %342 = vmatpush1.msra.mxu0 0.0
      %343 = vmatprep.subr.mxu0 0.0
      %344 = vmatpush1.msra.mxu0 %v208
      %345 = vmatprep.subr.mxu0 0.0
      %346 = vmatpush2.msra.mxu0 0.0
      %347 = vmatprep.subr.mxu0 0.0
      %348 = vmatpush2.msra.mxu0 0.0
      %349 = vmatprep.subr.mxu0 0.0
      %350 = vmatpush2.msra.mxu0 0.0
      %351 = vmatprep.subr.mxu0 0.0
      %352 = vmatpush2.msra.mxu0 0.0
      %353 = vmatprep.subr.mxu0 0.0
      %354 = vmatpush2.msra.mxu0 0.0
      %355 = vmatprep.subr.mxu0 0.0
      %356 = vmatpush2.msra.mxu0 0.0
      %357 = vmatprep.subr.mxu0 0.0
      %358 = vmatpush2.msra.mxu0 0.0
      %359 = vmatprep.subr.mxu0 0.0
      %360 = vmatpush2.msra.mxu0 0.0
      %361 = vmatprep.subr.mxu0 0.0
      %362 = vmatpush2.msra.mxu0 0.0
      %363 = vmatprep.subr.mxu0 0.0
      %364 = vmatpush2.msra.mxu0 0.0
      %365 = vmatprep.subr.mxu0 0.0
      %366 = vmatpush2.msra.mxu0 0.0
      %367 = vmatprep.subr.mxu0 0.0
      %368 = vmatpush2.msra.mxu0 0.0
      %369 = vmatprep.subr.mxu0 0.0
      %370 = vmatpush2.msra.mxu0 0.0
      %371 = vmatprep.subr.mxu0 0.0
      %372 = vmatpush2.msra.mxu0 0.0
      %373 = vmatprep.subr.mxu0 0.0
      %374 = vmatpush2.msra.mxu0 0.0
      %375 = vmatprep.subr.mxu0 0.0
      %376 = vmatpush2.msra.mxu0 0.0
      %377 = vmatprep.mubr.f32.mxu0 0.0
      %378 = vmatmul.mubr.f32.gmra.mxu0 %v218
      %v379 = vpop.f32.mrf.mxu0
      %v380 = vadd.f32 %v214, %v379
      %v381 = vpop.f32.mrf.mxu0
      %382 = vmatprep.mubr.f32.mxu0 0.0
      %383 = vmatmul.mubr.f32.gmra.mxu0 %v221
      %v384 = vpop.f32.mrf.mxu0
      %v385 = vadd.f32 %v214, %v384
      %v386 = vpop.f32.mrf.mxu0
      %387 = vmatprep.mubr.f32.mxu0 0.0
      %388 = vmatmul.mubr.f32.gmra.mxu0 %v224
      %v389 = vpop.f32.mrf.mxu0
      %v390 = vadd.f32 %v214, %v389
      %v391 = vpop.f32.mrf.mxu0
      %392 = vmatprep.mubr.f32.mxu0 0.0
      %393 = vmatmul.mubr.f32.gmra.mxu0 %v227
      %v394 = vpop.f32.mrf.mxu0
      %v395 = vadd.f32 %v214, %v394
      %v396 = vpop.f32.mrf.mxu0
      %397 = vmatprep.mubr.f32.mxu0 0.0
      %398 = vmatmul.mubr.f32.gmra.mxu0 %v230
      %v399 = vpop.f32.mrf.mxu0
      %v400 = vadd.f32 %v214, %v399
      %v401 = vpop.f32.mrf.mxu0
      %402 = vmatprep.mubr.f32.mxu0 0.0
      %403 = vmatmul.mubr.f32.gmra.mxu0 %v233
      %v404 = vpop.f32.mrf.mxu0
      %v405 = vadd.f32 %v214, %v404
      %v406 = vpop.f32.mrf.mxu0
      %407 = vmatprep.mubr.f32.mxu0 0.0
      %408 = vmatmul.mubr.f32.gmra.mxu0 %v236
      %v409 = vpop.f32.mrf.mxu0
      %v410 = vadd.f32 %v214, %v409
      %v411 = vpop.f32.mrf.mxu0
      %412 = vmatprep.mubr.f32.mxu0 0.0
      %413 = vmatmul.mubr.f32.gmra.mxu0 %v239
      %v414 = vpop.f32.mrf.mxu0
      %v415 = vadd.f32 %v214, %v414
      %v416 = vpop.f32.mrf.mxu0
      %417 = vmatprep.mubr.f32.mxu0 0.0
      %418 = vmatmul.mubr.f32.gmra.mxu0 %v242
      %v419 = vpop.f32.mrf.mxu0
      %v420 = vadd.f32 %v214, %v419
      %v421 = vpop.f32.mrf.mxu0
      %422 = vmatprep.mubr.f32.mxu0 0.0
      %423 = vmatmul.mubr.f32.gmra.mxu0 %v245
      %v424 = vpop.f32.mrf.mxu0
      %v425 = vadd.f32 %v214, %v424
      %v426 = vpop.f32.mrf.mxu0
      %427 = vmatprep.mubr.f32.mxu0 0.0
      %428 = vmatmul.mubr.f32.gmra.mxu0 %v248
      %v429 = vpop.f32.mrf.mxu0
      %v430 = vadd.f32 %v214, %v429
      %v431 = vpop.f32.mrf.mxu0
      %432 = vmatprep.mubr.f32.mxu0 0.0
      %433 = vmatmul.mubr.f32.gmra.mxu0 %v251
      %v434 = vpop.f32.mrf.mxu0
      %v435 = vadd.f32 %v214, %v434
      %v436 = vpop.f32.mrf.mxu0
      %437 = vmatprep.mubr.f32.mxu0 0.0
      %438 = vmatmul.mubr.f32.gmra.mxu0 %v254
      %v439 = vpop.f32.mrf.mxu0
      %v440 = vadd.f32 %v214, %v439
      %v441 = vpop.f32.mrf.mxu0
      %442 = vmatprep.mubr.f32.mxu0 0.0
      %443 = vmatmul.mubr.f32.gmra.mxu0 %v257
      %v444 = vpop.f32.mrf.mxu0
      %v445 = vadd.f32 %v214, %v444
      %v446 = vpop.f32.mrf.mxu0
      %447 = vmatprep.mubr.f32.mxu0 0.0
      %448 = vmatmul.mubr.f32.gmra.mxu0 %v260
      %v449 = vpop.f32.mrf.mxu0
      %v450 = vadd.f32 %v214, %v449
      %v451 = vpop.f32.mrf.mxu0
      %452 = vmatprep.mubr.f32.mxu0 0.0
      %453 = vmatmul.mubr.f32.gmra.mxu0 %v263
      %v454 = vpop.f32.mrf.mxu0
      %v455 = vadd.f32 %v214, %v454
      %v456 = vpop.f32.mrf.mxu0
      %457 = vmatprep.mubr.f32.mxu0 0.0
      %458 = vmatmul.mubr.f32.gmra.mxu0 %v266
      %v459 = vpop.f32.mrf.mxu0
      %v460 = vadd.f32 %v214, %v459
      %v461 = vpop.f32.mrf.mxu0
      %462 = vmatprep.mubr.f32.mxu0 0.0
      %463 = vmatmul.mubr.f32.gmra.mxu0 %v269
      %v464 = vpop.f32.mrf.mxu0
      %v465 = vadd.f32 %v214, %v464
      %v466 = vpop.f32.mrf.mxu0
      %467 = vmatprep.mubr.f32.mxu0 0.0
      %468 = vmatmul.mubr.f32.gmra.mxu0 %v272
      %v469 = vpop.f32.mrf.mxu0
      %v470 = vadd.f32 %v214, %v469
      %v471 = vpop.f32.mrf.mxu0
      %472 = vmatprep.mubr.f32.mxu0 0.0
      %473 = vmatmul.mubr.f32.gmra.mxu0 %v275
      %v474 = vpop.f32.mrf.mxu0
      %v475 = vadd.f32 %v214, %v474
      %v476 = vpop.f32.mrf.mxu0
      %477 = vmatprep.mubr.f32.mxu0 0.0
      %478 = vmatmul.mubr.f32.gmra.mxu0 %v278
      %v479 = vpop.f32.mrf.mxu0
      %v480 = vadd.f32 %v214, %v479
      %v481 = vpop.f32.mrf.mxu0
      %482 = vmatprep.mubr.f32.mxu0 0.0
      %483 = vmatmul.mubr.f32.gmra.mxu0 %v281
      %v484 = vpop.f32.mrf.mxu0
      %v485 = vadd.f32 %v214, %v484
      %v486 = vpop.f32.mrf.mxu0
      %487 = vmatprep.mubr.f32.mxu0 0.0
      %488 = vmatmul.mubr.f32.gmra.mxu0 %v284
      %v489 = vpop.f32.mrf.mxu0
      %v490 = vadd.f32 %v214, %v489
      %v491 = vpop.f32.mrf.mxu0
      %492 = vmatprep.mubr.f32.mxu0 0.0
      %493 = vmatmul.mubr.f32.gmra.mxu0 %v287
      %v494 = vpop.f32.mrf.mxu0
      %v495 = vadd.f32 %v214, %v494
      %v496 = vpop.f32.mrf.mxu0
      %497 = vmatprep.mubr.f32.mxu0 0.0
      %498 = vmatmul.mubr.f32.gmra.mxu0 %v290
      %v499 = vpop.f32.mrf.mxu0
      %v500 = vadd.f32 %v214, %v499
      %v501 = vpop.f32.mrf.mxu0
      %502 = vmatprep.mubr.f32.mxu0 0.0
      %503 = vmatmul.mubr.f32.gmra.mxu0 %v293
      %v504 = vpop.f32.mrf.mxu0
      %v505 = vadd.f32 %v214, %v504
      %v506 = vpop.f32.mrf.mxu0
      %507 = vmatprep.mubr.f32.mxu0 0.0
      %508 = vmatmul.mubr.f32.gmra.mxu0 %v296
      %v509 = vpop.f32.mrf.mxu0
      %v510 = vadd.f32 %v214, %v509
      %v511 = vpop.f32.mrf.mxu0
      %512 = vmatprep.mubr.f32.mxu0 0.0
      %513 = vmatmul.mubr.f32.gmra.mxu0 %v299
      %v514 = vpop.f32.mrf.mxu0
      %v515 = vadd.f32 %v214, %v514
      %v516 = vpop.f32.mrf.mxu0
      %517 = vmatprep.mubr.f32.mxu0 0.0
      %518 = vmatmul.mubr.f32.gmra.mxu0 %v302
      %v519 = vpop.f32.mrf.mxu0
      %v520 = vadd.f32 %v214, %v519
      %v521 = vpop.f32.mrf.mxu0
      %522 = vmatprep.mubr.f32.mxu0 0.0
      %523 = vmatmul.mubr.f32.gmra.mxu0 %v305
      %v524 = vpop.f32.mrf.mxu0
      %v525 = vadd.f32 %v214, %v524
      %v526 = vpop.f32.mrf.mxu0
      %527 = vmatprep.mubr.f32.mxu0 0.0
      %528 = vmatmul.mubr.f32.gmra.mxu0 %v308
      %v529 = vpop.f32.mrf.mxu0
      %v530 = vadd.f32 %v214, %v529
      %v531 = vpop.f32.mrf.mxu0
      %532 = vmatprep.mubr.f32.mxu0 0.0
      %533 = vmatmul.mubr.f32.gmra.mxu0 %v311
      %v534 = vpop.f32.mrf.mxu0
      %v535 = vadd.f32 %v214, %v534
      %v536 = vpop.f32.mrf.mxu0
      %537 = vdwg.mxu0
      %vm538 = vcmask 130048
      %539 = vst.msk [vmem:[#allocation2] sm:$0xff] %vm538, %v380
      %540 = vst.msk [vmem:[#allocation2 + $0x8] sm:$0xff] %vm538, %v385
      %541 = vst.msk [vmem:[#allocation2 + $0x10] sm:$0xff] %vm538, %v390
      %542 = vst.msk [vmem:[#allocation2 + $0x18] sm:$0xff] %vm538, %v395
      %543 = vst.msk [vmem:[#allocation2 + $0x20] sm:$0xff] %vm538, %v400
      %544 = vst.msk [vmem:[#allocation2 + $0x28] sm:$0xff] %vm538, %v405
      %545 = vst.msk [vmem:[#allocation2 + $0x30] sm:$0xff] %vm538, %v410
      %546 = vst.msk [vmem:[#allocation2 + $0x38] sm:$0xff] %vm538, %v415
      %547 = vst.msk [vmem:[#allocation2 + $0x40] sm:$0xff] %vm538, %v420
      %548 = vst.msk [vmem:[#allocation2 + $0x48] sm:$0xff] %vm538, %v425
      %549 = vst.msk [vmem:[#allocation2 + $0x50] sm:$0xff] %vm538, %v430
      %550 = vst.msk [vmem:[#allocation2 + $0x58] sm:$0xff] %vm538, %v435
      %551 = vst.msk [vmem:[#allocation2 + $0x60] sm:$0xff] %vm538, %v440
      %552 = vst.msk [vmem:[#allocation2 + $0x68] sm:$0xff] %vm538, %v445
      %553 = vst.msk [vmem:[#allocation2 + $0x70] sm:$0xff] %vm538, %v450
      %554 = vst.msk [vmem:[#allocation2 + $0x78] sm:$0xff] %vm538, %v455
      %555 = vst.msk [vmem:[#allocation2 + $0x80] sm:$0xff] %vm538, %v460
      %556 = vst.msk [vmem:[#allocation2 + $0x88] sm:$0xff] %vm538, %v465
      %557 = vst.msk [vmem:[#allocation2 + $0x90] sm:$0xff] %vm538, %v470
      %558 = vst.msk [vmem:[#allocation2 + $0x98] sm:$0xff] %vm538, %v475
      %559 = vst.msk [vmem:[#allocation2 + $0xa0] sm:$0xff] %vm538, %v480
      %560 = vst.msk [vmem:[#allocation2 + $0xa8] sm:$0xff] %vm538, %v485
      %561 = vst.msk [vmem:[#allocation2 + $0xb0] sm:$0xff] %vm538, %v490
      %562 = vst.msk [vmem:[#allocation2 + $0xb8] sm:$0xff] %vm538, %v495
      %563 = vst.msk [vmem:[#allocation2 + $0xc0] sm:$0xff] %vm538, %v500
      %564 = vst.msk [vmem:[#allocation2 + $0xc8] sm:$0xff] %vm538, %v505
      %565 = vst.msk [vmem:[#allocation2 + $0xd0] sm:$0xff] %vm538, %v510
      %566 = vst.msk [vmem:[#allocation2 + $0xd8] sm:$0xff] %vm538, %v515
      %567 = vst.msk [vmem:[#allocation2 + $0xe0] sm:$0xff] %vm538, %v520
      %568 = vst.msk [vmem:[#allocation2 + $0xe8] sm:$0xff] %vm538, %v525
      %569 = vst.msk [vmem:[#allocation2 + $0xf0] sm:$0xff] %vm538, %v530
      %570 = vst.msk [vmem:[#allocation2 + $0xf8] sm:$0xff] %vm538, %v535
      loop: start=0, step=1, limit=16
      $region33: #{upconv_pallas.1} parent=31 // loop_pre_header
        _
      $region34: #{upconv_pallas.1} parent=31 // loop_header
        %s572 = sphi 0, %s576
        %p573 = scmp.ge.s32.totalorder %s572, 16
      $region35: #{upconv_pallas.1} parent=31 // loop_header_branch
        %575 = sbr.rel (%p573) target = $region39
      $region36: #{upconv_pallas.1} parent=31 // loop_body
        %s577 = smul.u32 %s572, 16
        %s578 = scalar_lea.vmem [#allocation2], %s577
        %v579 = vld [vmem:[%s578] sm:$0xff]
        %v580 = vld [vmem:[%s578 + $0x8] sm:$0xff]
        %s581 = smul.u32 %s572, 2
        %s582 = smul.u32 %s581, 16
        %s583 = scalar_lea.vmem %s174, %s582
        %584 = vst.msk [vmem:[%s583] sm:$0xff] %vm216, %v579
        %585 = vst.msk [vmem:[%s583 + $0x8] sm:$0xff] %vm216, %v580
        %s586 = sadd.s32 %s581, 1
        %589 = vrot.lane.b32.xlu0 %v579, 120
        %v590 = vpop.permute.xlu0 %589
        %591 = vrot.lane.b32.xlu0 %v580, 120
        %v592 = vpop.permute.xlu0 %591
        %s595 = smul.u32 %s586, 16
        %s596 = scalar_lea.vmem %s174, %s595
        %597 = vst.msk [vmem:[%s596] sm:$0xff] %vm216, %v590
        %598 = vst.msk [vmem:[%s596 + $0x8] sm:$0xff] %vm216, %v592
      $region37: #{upconv_pallas.1} parent=31 // loop_footer
        %s576 = sadd.s32 1, %s572
      $region38: #{upconv_pallas.1} parent=31 // loop_footer_branch
        %571 = sbr.rel target = $region34
      $region39: #{upconv_pallas.1} parent=31 // loop_exit
        _
      %s599 = smul.u32 32, %s14
      %p600 = scmp.lt.s32.totalorder %s599, 63
      %s601 = scalar_select %p600, %s599, 63
      %s602 = smul.addr %s601, 2
      %s603 = smul.addr %s602, 8
      %s604 = scalar_lea.vmem %s3, %s603
      // Predicated region
      $region40: #{upconv_pallas.1} parent=31 // pred_check
        %p605 = pneg %p100
      $region41: #{upconv_pallas.1} parent=31 // pred_check_branch
        %607 = sbr.rel (%p605) target = $region43
      $region42: #{upconv_pallas.1} parent=31 // pred_region
        %s608 = smul.u32 32, %s14
      $region43: #{upconv_pallas.1} parent=31 // pred_fallthru
        _
    $region32: #{upconv_pallas.1} parent=5 // pred_fallthru
      _
    %p609 = scmp.le.s32.totalorder 2, %s9
    // Predicated region
    $region44: #{upconv_pallas.1} parent=5 // pred_check
      %p610 = pneg %p609
    $region45: #{upconv_pallas.1} parent=5 // pred_check_branch
      %612 = sbr.rel (%p610) target = $region47
    $region46: #{upconv_pallas.1} parent=5 // pred_region
      %s613 = ssub.s32 %s9, 2
      // Predicated region
      $region48: #{upconv_pallas.1} parent=46 // pred_check
        %p614 = pneg %p106
      $region49: #{upconv_pallas.1} parent=46 // pred_check_branch
        %616 = sbr.rel (%p614) target = $region51
      $region50: #{upconv_pallas.1} parent=46 // pred_region
        %s617 = smul.u32 32, %s15
        %p618 = scmp.lt.s32.totalorder %s617, 63
        %s619 = scalar_select %p618, %s617, 63
        %s620 = smul.addr %s619, 2
        %s621 = smul.addr %s620, 8
        %s622 = scalar_lea.vmem %s3, %s621
      $region51: #{upconv_pallas.1} parent=46 // pred_fallthru
        _
    $region47: #{upconv_pallas.1} parent=5 // pred_fallthru
      _
  $region6: #{upconv_pallas.1} parent=0 // loop_footer
    %s13 = sadd.s32 1, %s9
  $region7: #{upconv_pallas.1} parent=0 // loop_footer_branch
    %8 = sbr.rel target = $region3
  $region8: #{upconv_pallas.1} parent=0 // loop_exit
    _

</llo_original>
